<compile_context>
chip_gen: v6e
topology: v6e:2x2x1
jax: 0.10.0
libtpu: 0.0.40
codegen_flags: <defaults>
</compile_context>

<pallas_src>
import functools

import jax
import jax.numpy as jnp
from jax.experimental import pallas as pl
from jax.experimental.pallas import tpu as pltpu


def _saturate_kernel(x_ref, o_ref, *, v_l):
    # Lower-bound saturation on one VMEM tile: out = max(x, v_l).
    o_ref[...] = jnp.maximum(x_ref[...], jnp.asarray(v_l, dtype=x_ref.dtype))


def saturate(x: jax.Array, v_l: float, *, donate_input: bool = False,
             target_tile_bytes: int = 2 * 1024 * 1024) -> jax.Array:
    """Elementwise lower-bound saturation: out[i] = max(x[i], v_l).

    x: any shape (NCHW in the reference module); v_l: python float threshold.
    Note: for integer dtypes v_l is cast toward the tensor dtype (float dtypes
    are the intended use, matching the SNN module).
    """
    orig_shape = x.shape
    dtype = x.dtype
    n_elem = x.size
    if n_elem == 0:
        return x

    LANE = 128
    itemsize = jnp.dtype(dtype).itemsize
    sub_pack = (8 * 4) // itemsize  # sublane pack: 8 (f32) / 16 (bf16) / 32 (int8)

    if n_elem % LANE == 0:
        # Lane-dense view: (rows, 128) — no padding, no extra HBM passes,
        # unmasked full-lane vector stores on the output.
        cols = LANE
        rows = n_elem // LANE
    else:
        # Ragged total: keep the original trailing dim (block last dim == full
        # array dim satisfies the layout exception) — still zero-copy, just
        # less lane-dense for odd trailing sizes.
        cols = orig_shape[-1] if len(orig_shape) >= 1 else 1
        rows = n_elem // cols

    x2d = x.reshape(rows, cols)

    # Per-step tile of ~target_tile_bytes; block_rows a multiple of the sublane
    # pack, or the full row count (full-array-dim exception) for small inputs.
    target_rows = max(sub_pack, target_tile_bytes // (cols * itemsize))
    target_rows = max(sub_pack, (target_rows // sub_pack) * sub_pack)
    block_rows = rows if rows <= target_rows else target_rows

    grid = (pl.cdiv(rows, block_rows),)

    kernel = functools.partial(_saturate_kernel, v_l=v_l)

    out2d = pl.pallas_call(
        kernel,
        out_shape=jax.ShapeDtypeStruct((rows, cols), dtype),
        grid=grid,
        in_specs=[pl.BlockSpec((block_rows, cols), lambda i: (i, 0))],
        out_specs=pl.BlockSpec((block_rows, cols), lambda i: (i, 0)),
        input_output_aliases=({0: 0} if donate_input else {}),
        compiler_params=pltpu.CompilerParams(
            dimension_semantics=("parallel",),
        ),
    )(x2d)

    return out2d.reshape(orig_shape)


if __name__ == "__main__":
    key = jax.random.PRNGKey(0)
    v_l = -0.5

    # NCHW input matching the PyTorch module's expected layout.
    x = jax.random.normal(key, (2, 4, 16, 16), dtype=jnp.float32)
    out = jax.block_until_ready(saturate(x, v_l))
    ref = jnp.maximum(x, jnp.asarray(v_l, x.dtype))
    assert out.shape == x.shape and out.dtype == x.dtype
    assert jnp.array_equal(out, ref), "mismatch vs reference (lane-dense path)"

    # Multi-step grid (small shape, small tile target) — exercises pipelining
    # and the 'parallel' grid axis with >1 step.
    x2 = jax.random.normal(jax.random.PRNGKey(1), (4, 8, 32, 32), dtype=jnp.float32)
    out2 = jax.block_until_ready(saturate(x2, v_l, target_tile_bytes=64 * 1024))
    assert jnp.array_equal(out2, jnp.maximum(x2, jnp.asarray(v_l, x2.dtype)))

    # Ragged total element count (not a multiple of 128) — zero-copy fallback.
    x3 = jax.random.normal(jax.random.PRNGKey(2), (2, 3, 5, 7), dtype=jnp.float32)
    out3 = jax.block_until_ready(saturate(x3, v_l))
    assert jnp.array_equal(out3, jnp.maximum(x3, jnp.asarray(v_l, x3.dtype)))

    # bf16 path (sublane pack = 16).
    x4 = jax.random.normal(jax.random.PRNGKey(3), (2, 4, 16, 16), dtype=jnp.bfloat16)
    out4 = jax.block_until_ready(saturate(x4, v_l))
    assert out4.dtype == jnp.bfloat16
    assert jnp.array_equal(out4, jnp.maximum(x4, jnp.asarray(v_l, x4.dtype)))

    # Donated-input path (in-place style via input_output_aliases).
    x5 = jax.random.normal(jax.random.PRNGKey(4), (2, 4, 16, 16), dtype=jnp.float32)
    out5 = jax.block_until_ready(saturate(x5, v_l, donate_input=True))
    assert jnp.array_equal(out5, jnp.maximum(x5, jnp.asarray(v_l, x5.dtype)))

    print("KERNEL_OK")
</pallas_src>

<mosaic_0001>
module attributes {stable_mosaic.version = 11 : i64} {
  func.func @_saturate_kernel(%arg0: i32, %arg1: memref<16x128xf32, #tpu.memory_space<vmem>>, %arg2: memref<16x128xf32, #tpu.memory_space<vmem>>) attributes {dimension_semantics = [#tpu.dimension_semantics<parallel>], iteration_bounds = array<i64: 1>, scalar_prefetch = 0 : i64, scratch_operands = 0 : i64, tpu.core_type = #tpu.core_type<tc>, window_params = [{transform_indices = @transform_0, window_bounds = array<i64: 16, 128>}, {transform_indices = @transform_1, window_bounds = array<i64: 16, 128>}]} {
    %c0 = arith.constant 0 : index
    %c0_0 = arith.constant 0 : index
    %0 = vector.load %arg1[%c0, %c0_0] : memref<16x128xf32, #tpu.memory_space<vmem>>, vector<16x128xf32>
    %cst = arith.constant -5.000000e-01 : f32
    %1 = vector.broadcast %cst : f32 to vector<16x128xf32>
    %2 = arith.maximumf %0, %1 : vector<16x128xf32>
    %c0_1 = arith.constant 0 : index
    %c0_2 = arith.constant 0 : index
    %3 = vector.load %arg2[%c0_1, %c0_2] : memref<16x128xf32, #tpu.memory_space<vmem>>, vector<16x128xf32>
    tpu.vector_store %arg2[%c0_1, %c0_2], %2 {strides = array<i32>} : memref<16x128xf32, #tpu.memory_space<vmem>>, vector<16x128xf32>,
    return
  }
  func.func @transform_0(%arg0: i32) -> (i32, i32) {
    %c0_i32 = arith.constant 0 : i32
    %c0_i32_0 = arith.constant 0 : i32
    return %arg0, %c0_i32 : i32, i32
  }
  func.func @transform_1(%arg0: i32) -> (i32, i32) {
    %c0_i32 = arith.constant 0 : i32
    %c0_i32_0 = arith.constant 0 : i32
    return %arg0, %c0_i32 : i32, i32
  }
}

</mosaic_0001>

<llo_original>
// kernel: tpu_custom_call.1
$region0: #{tpu_custom_call.1}
  #allocation0 [shape = 'u32[]', space=smem, size = 0x4, offset = 0x4, fixed_abs, tag = 'smem constant byte address 0x4 - core index']
  #allocation1 [shape = 'u32[144,128]{1,0:T(1,128)}', space=vmem, size = 0x12000, scoped, tag = 'internal scratch']
  %s0 = inlined_call_operand.hbm [shape: f32[16,128], index: 0, kind: input, shape index: {}]
  %s1 = inlined_call_operand.hbm [shape: f32[16,128], index: 1, kind: output, shape index: {}]
  %s2 = sld [smem:[#allocation0]]
  $region18: #{tpu_custom_call.1} parent=0
    _
  %s4 = ssub.s32 1, %s2
  %s5 = scalar_select 0, %s4, %s2
  $region1: #{tpu_custom_call.1} parent=0
    #allocation2 [shape = 'u8[8192]{0}', space=vmem, size = 0x2000, scoped, tag = 'input window, operand 0, single buffered']
    #allocation3 [shape = 's32[1]{0}', space=sflag, size = 0x4, scoped, tag = 'scoped memory for tpu_custom_call.1']
    #allocation4 [shape = 's32[1]{0}', space=sflag, size = 0x4, scoped, tag = 'scoped memory for tpu_custom_call.1']
    #allocation5 [shape = 'u8[8192]{0}', space=vmem, size = 0x2000, scoped, tag = 'output window, operand 0, single buffered']
    %6 = vsyncpa [#allocation3], 0
    %7 = vsyncpa [#allocation4], 0
    // Predicated region
    $region2: #{tpu_custom_call.1} parent=1 // pred_check
      _
    $region3: #{tpu_custom_call.1} parent=1 // pred_check_branch
      %9 = sbr.rel (0) target = $region5
    $region4: #{tpu_custom_call.1} parent=1 // pred_region
      %s11 = ssub.s32 256, 256
      %12 = vsyncadd [#allocation3], %s11
      %s13 = sshll.u32 [#allocation2], 4
      %s14 = int_to_ptr.vmem [resolvable:$true] %s13
      %19 = dma.hbm_to_vmem [thread:$0]  %s0, 256, %s14, [#allocation3], 128, 128, 8
    $region5: #{tpu_custom_call.1} parent=1 // pred_fallthru
      _
    // Predicated region
    $region6: #{tpu_custom_call.1} parent=1 // pred_check
      _
    $region7: #{tpu_custom_call.1} parent=1 // pred_check_branch
      %21 = sbr.rel (0) target = $region9
    $region8: #{tpu_custom_call.1} parent=1 // pred_region
      %22 = dma.done [#allocation3], 256
    $region9: #{tpu_custom_call.1} parent=1 // pred_fallthru
      _
    %v23 = vld [vmem:[#allocation2] sm:$0xff]
    %v24 = vld [vmem:[#allocation2 + $0x8] sm:$0xff]
    %v25 = vmax.f32 %v23, -0.5
    %v26 = vmax.f32 %v24, -0.5
    %27 = vst [vmem:[#allocation5] sm:$0xff] %v25
    %28 = vst [vmem:[#allocation5 + $0x8] sm:$0xff] %v26
    // Predicated region
    $region10: #{tpu_custom_call.1} parent=1 // pred_check
      _
    $region11: #{tpu_custom_call.1} parent=1 // pred_check_branch
      %30 = sbr.rel (0) target = $region13
    $region12: #{tpu_custom_call.1} parent=1 // pred_region
      %s32 = ssub.s32 256, 256
      %33 = vsyncadd [#allocation4], %s32
      %s34 = sshll.u32 [#allocation5], 4
      %s35 = int_to_ptr.vmem [resolvable:$true] %s34
      %40 = dma.vmem_to_hbm [thread:$0]  %s35, 256, %s1, [#allocation4], 128, 128, 8
    $region13: #{tpu_custom_call.1} parent=1 // pred_fallthru
      _
    // Predicated region
    $region14: #{tpu_custom_call.1} parent=1 // pred_check
      _
    $region15: #{tpu_custom_call.1} parent=1 // pred_check_branch
      %42 = sbr.rel (0) target = $region17
    $region16: #{tpu_custom_call.1} parent=1 // pred_region
      %43 = dma.done [#allocation4], 256
    $region17: #{tpu_custom_call.1} parent=1 // pred_fallthru
      _
    %44 = vsyncpa [#allocation3], 1
    %45 = vsyncpa [#allocation4], 1

</llo_original>
